<compile_context>
chip_gen: v5e
topology: v5e:2x2
jax: 0.10.0
libtpu: 0.0.40
codegen_flags: <defaults>
</compile_context>

<pallas_src>
import jax
import jax.numpy as jnp
from jax.experimental import pallas as pl
from jax.experimental.pallas import tpu as pltpu

PAD = 128        # lane width; weight tiles are padded to PAD x PAD
IN_SIZE = 99     # input_size
HIDDEN = 64
LATENT = 32


def _round_up(x, m):
    return ((x + m - 1) // m) * m


def pose_autoencoder_kernel(
    x_ref,                 # (TB, 99)   unpadded input tile
    w1_ref, b1_ref,        # (128, 128), (1, 128)  encoder linear 1 (99->64, padded)
    w2_ref, b2_ref,        # (128, 128), (1, 128)  encoder linear 2 (64->32, padded)
    w3_ref, b3_ref,        # (128, 128), (1, 128)  decoder linear 1 (32->64, padded)
    w4_ref, b4_ref,        # (128, 128), (1, 128)  decoder linear 2 (64->99, padded)
    out_ref,               # (TB, 99)   unpadded output tile
    x_pad_ref,             # VMEM scratch (TB, 128) lane-dense staging buffer
):
    # Build a lane-dense (TB, 128) view of x entirely in VMEM:
    # zero the buffer (guarantees lanes >= 99 are exactly 0 on every core/step),
    # then masked-store the 99 real lanes over it.
    x_pad_ref[...] = jnp.zeros_like(x_pad_ref)
    x_pad_ref[:, :IN_SIZE] = x_ref[...]
    x = x_pad_ref[...]

    # ---- encoder ----
    h1 = jnp.maximum(
        jnp.dot(x, w1_ref[...], preferred_element_type=jnp.float32) + b1_ref[...], 0.0
    )
    z = jnp.dot(h1, w2_ref[...], preferred_element_type=jnp.float32) + b2_ref[...]

    # ---- decoder ----
    h2 = jnp.maximum(
        jnp.dot(z, w3_ref[...], preferred_element_type=jnp.float32) + b3_ref[...], 0.0
    )
    y = jnp.dot(h2, w4_ref[...], preferred_element_type=jnp.float32) + b4_ref[...]

    # Only the 99 valid lanes are stored back (masked vst); no post-call slice needed.
    out_ref[...] = y[:, :IN_SIZE].astype(out_ref.dtype)


def prepare_padded_params(params):
    """One-time prep: transpose PyTorch (out,in) weights to (in,out) and zero-pad
    to (128,128); biases to (1,128). Zero padding keeps the forward math exact."""

    def pad_linear(w, b):
        fan_out, fan_in = w.shape
        wp = jnp.zeros((PAD, PAD), w.dtype).at[:fan_in, :fan_out].set(w.T)
        bp = jnp.zeros((1, PAD), b.dtype).at[0, :fan_out].set(b)
        return wp, bp

    w1, b1 = pad_linear(params["enc0_w"], params["enc0_b"])
    w2, b2 = pad_linear(params["enc2_w"], params["enc2_b"])
    w3, b3 = pad_linear(params["dec0_w"], params["dec0_b"])
    w4, b4 = pad_linear(params["dec2_w"], params["dec2_b"])
    return (w1, b1, w2, b2, w3, b3, w4, b4)


def pose_autoencoder_forward(x, padded_params, *, max_batch_tile=1024, min_grid_steps=2):
    """x: (B, 99) f32. padded_params: output of prepare_padded_params. Returns (B, 99)."""
    w1, b1, w2, b2, w3, b3, w4, b4 = padded_params
    batch, input_size = x.shape
    assert input_size == IN_SIZE, input_size

    # Tile selection: enough steps to respect max_batch_tile, and >= 2 steps when the
    # batch allows so v7x can shard the batch axis across both TensorCores; tb is a
    # multiple of 8 sublanes and the last-tile remainder stays < one tile.
    n_steps = max(pl.cdiv(batch, max_batch_tile), 1)
    if batch >= 2 * 8:
        n_steps = max(n_steps, min_grid_steps)
    tb = _round_up(pl.cdiv(batch, n_steps), 8)
    grid = (pl.cdiv(batch, tb),)

    x_spec = pl.BlockSpec((tb, IN_SIZE), lambda i: (i, 0))        # 99 == full last dim
    w_spec = pl.BlockSpec((PAD, PAD), lambda i: (0, 0))           # resident across tiles
    b_spec = pl.BlockSpec((1, PAD), lambda i: (0, 0))
    out_spec = pl.BlockSpec((tb, IN_SIZE), lambda i: (i, 0))

    flops = 2 * batch * (IN_SIZE * HIDDEN + HIDDEN * LATENT + LATENT * HIDDEN + HIDDEN * IN_SIZE)
    bytes_accessed = (2 * batch * IN_SIZE + 4 * PAD * PAD + 4 * PAD) * 4

    return pl.pallas_call(
        pose_autoencoder_kernel,
        out_shape=jax.ShapeDtypeStruct((batch, IN_SIZE), x.dtype),
        grid_spec=pltpu.PrefetchScalarGridSpec(
            num_scalar_prefetch=0,
            grid=grid,
            in_specs=[
                x_spec,
                w_spec, b_spec,
                w_spec, b_spec,
                w_spec, b_spec,
                w_spec, b_spec,
            ],
            out_specs=out_spec,
            scratch_shapes=[pltpu.VMEM((tb, PAD), jnp.float32)],
        ),
        compiler_params=pltpu.CompilerParams(
            dimension_semantics=("parallel",),   # v7x: shard batch tiles across 2 TCs
        ),
        cost_estimate=pl.CostEstimate(
            flops=flops, transcendentals=0, bytes_accessed=bytes_accessed
        ),
    )(x, w1, b1, w2, b2, w3, b3, w4, b4)


def init_params(key, input_size=IN_SIZE, latent_size=LATENT, hidden=HIDDEN):
    """Deterministic init with PyTorch nn.Linear conventions: W is (out, in)."""
    ks = jax.random.split(key, 8)

    def linear(kw, kb, fan_in, fan_out):
        bound = 1.0 / jnp.sqrt(fan_in)
        w = jax.random.uniform(kw, (fan_out, fan_in), jnp.float32, -bound, bound)
        b = jax.random.uniform(kb, (fan_out,), jnp.float32, -bound, bound)
        return w, b

    enc0_w, enc0_b = linear(ks[0], ks[1], input_size, hidden)
    enc2_w, enc2_b = linear(ks[2], ks[3], hidden, latent_size)
    dec0_w, dec0_b = linear(ks[4], ks[5], latent_size, hidden)
    dec2_w, dec2_b = linear(ks[6], ks[7], hidden, input_size)
    return {
        "enc0_w": enc0_w, "enc0_b": enc0_b,
        "enc2_w": enc2_w, "enc2_b": enc2_b,
        "dec0_w": dec0_w, "dec0_b": dec0_b,
        "dec2_w": dec2_w, "dec2_b": dec2_b,
    }


def reference_forward(x, p):
    h1 = jnp.maximum(x @ p["enc0_w"].T + p["enc0_b"], 0.0)
    z = h1 @ p["enc2_w"].T + p["enc2_b"]
    h2 = jnp.maximum(z @ p["dec0_w"].T + p["dec0_b"], 0.0)
    return h2 @ p["dec2_w"].T + p["dec2_b"]


if __name__ == "__main__":
    key = jax.random.PRNGKey(0)
    k_params, k_x = jax.random.split(key)

    batch = 16  # small test batch -> grid of 2 steps, exercises resident weights
    params = init_params(k_params)
    padded_params = prepare_padded_params(params)  # done once, outside the forward
    x = jax.random.normal(k_x, (batch, IN_SIZE), dtype=jnp.float32)

    out = pose_autoencoder_forward(x, padded_params)
    out = jax.block_until_ready(out)

    ref = reference_forward(x, params)
    assert out.shape == (batch, IN_SIZE), out.shape
    assert jnp.allclose(out, ref, atol=1e-4, rtol=1e-4), "mismatch vs JAX reference"

    print("KERNEL_OK")
</pallas_src>

<mosaic_0001>
module attributes {stable_mosaic.version = 11 : i64} {
  func.func @pose_autoencoder_kernel(%arg0: i32, %arg1: memref<8x99xf32, #tpu.memory_space<vmem>>, %arg2: memref<128x128xf32, #tpu.memory_space<vmem>>, %arg3: memref<1x128xf32, #tpu.memory_space<vmem>>, %arg4: memref<128x128xf32, #tpu.memory_space<vmem>>, %arg5: memref<1x128xf32, #tpu.memory_space<vmem>>, %arg6: memref<128x128xf32, #tpu.memory_space<vmem>>, %arg7: memref<1x128xf32, #tpu.memory_space<vmem>>, %arg8: memref<128x128xf32, #tpu.memory_space<vmem>>, %arg9: memref<1x128xf32, #tpu.memory_space<vmem>>, %arg10: memref<8x99xf32, #tpu.memory_space<vmem>>, %arg11: memref<8x128xf32, #tpu.memory_space<vmem>>) attributes {dimension_semantics = [#tpu.dimension_semantics<parallel>], iteration_bounds = array<i64: 2>, scalar_prefetch = 0 : i64, scratch_operands = 1 : i64, tpu.core_type = #tpu.core_type<tc>, window_params = [{transform_indices = @transform_0, window_bounds = array<i64: 8, 99>}, {pipeline_mode = #tpu.pipeline_mode<synchronous>, transform_indices = @transform_1, window_bounds = array<i64: 128, 128>}, {pipeline_mode = #tpu.pipeline_mode<synchronous>, transform_indices = @transform_2, window_bounds = array<i64: 1, 128>}, {pipeline_mode = #tpu.pipeline_mode<synchronous>, transform_indices = @transform_3, window_bounds = array<i64: 128, 128>}, {pipeline_mode = #tpu.pipeline_mode<synchronous>, transform_indices = @transform_4, window_bounds = array<i64: 1, 128>}, {pipeline_mode = #tpu.pipeline_mode<synchronous>, transform_indices = @transform_5, window_bounds = array<i64: 128, 128>}, {pipeline_mode = #tpu.pipeline_mode<synchronous>, transform_indices = @transform_6, window_bounds = array<i64: 1, 128>}, {pipeline_mode = #tpu.pipeline_mode<synchronous>, transform_indices = @transform_7, window_bounds = array<i64: 128, 128>}, {pipeline_mode = #tpu.pipeline_mode<synchronous>, transform_indices = @transform_8, window_bounds = array<i64: 1, 128>}, {transform_indices = @transform_9, window_bounds = array<i64: 8, 99>}]} {
    %cst = arith.constant 0.000000e+00 : f32
    %0 = vector.broadcast %cst : f32 to vector<8x128xf32>
    %c0 = arith.constant 0 : index
    %c0_0 = arith.constant 0 : index
    %1 = vector.load %arg11[%c0, %c0_0] : memref<8x128xf32, #tpu.memory_space<vmem>>, vector<8x128xf32>
    tpu.vector_store %arg11[%c0, %c0_0], %0 {strides = array<i32>} : memref<8x128xf32, #tpu.memory_space<vmem>>, vector<8x128xf32>,
    %c0_1 = arith.constant 0 : index
    %c0_2 = arith.constant 0 : index
    %2 = vector.load %arg1[%c0_1, %c0_2] : memref<8x99xf32, #tpu.memory_space<vmem>>, vector<8x99xf32>
    %c0_3 = arith.constant 0 : index
    %c0_4 = arith.constant 0 : index
    %3 = vector.load %arg11[%c0_3, %c0_4] : memref<8x128xf32, #tpu.memory_space<vmem>>, vector<8x99xf32>
    tpu.vector_store %arg11[%c0_3, %c0_4], %2 {strides = array<i32>} : memref<8x128xf32, #tpu.memory_space<vmem>>, vector<8x99xf32>,
    %c0_5 = arith.constant 0 : index
    %c0_6 = arith.constant 0 : index
    %4 = vector.load %arg11[%c0_5, %c0_6] : memref<8x128xf32, #tpu.memory_space<vmem>>, vector<8x128xf32>
    %c0_7 = arith.constant 0 : index
    %c0_8 = arith.constant 0 : index
    %5 = vector.load %arg2[%c0_7, %c0_8] : memref<128x128xf32, #tpu.memory_space<vmem>>, vector<128x128xf32>
    %cst_9 = arith.constant dense<0.000000e+00> : vector<8x128xf32>
    %6 = tpu.matmul %4, %5, %cst_9 {dimension_numbers = #tpu.dot_dimension_numbers<[1], [0], [0], [1], [0, 0, 1, 1], [], []>} : vector<8x128xf32>, vector<128x128xf32>, vector<8x128xf32> -> vector<8x128xf32>
    %c0_10 = arith.constant 0 : index
    %c0_11 = arith.constant 0 : index
    %7 = vector.load %arg3[%c0_10, %c0_11] : memref<1x128xf32, #tpu.memory_space<vmem>>, vector<1x128xf32>
    %8 = vector.broadcast %7 : vector<1x128xf32> to vector<8x128xf32>
    %9 = arith.addf %6, %8 : vector<8x128xf32>
    %cst_12 = arith.constant 0.000000e+00 : f32
    %10 = vector.broadcast %cst_12 : f32 to vector<8x128xf32>
    %11 = arith.maximumf %9, %10 : vector<8x128xf32>
    %c0_13 = arith.constant 0 : index
    %c0_14 = arith.constant 0 : index
    %12 = vector.load %arg4[%c0_13, %c0_14] : memref<128x128xf32, #tpu.memory_space<vmem>>, vector<128x128xf32>
    %cst_15 = arith.constant dense<0.000000e+00> : vector<8x128xf32>
    %13 = tpu.matmul %11, %12, %cst_15 {dimension_numbers = #tpu.dot_dimension_numbers<[1], [0], [0], [1], [0, 0, 1, 1], [], []>} : vector<8x128xf32>, vector<128x128xf32>, vector<8x128xf32> -> vector<8x128xf32>
    %c0_16 = arith.constant 0 : index
    %c0_17 = arith.constant 0 : index
    %14 = vector.load %arg5[%c0_16, %c0_17] : memref<1x128xf32, #tpu.memory_space<vmem>>, vector<1x128xf32>
    %15 = vector.broadcast %14 : vector<1x128xf32> to vector<8x128xf32>
    %16 = arith.addf %13, %15 : vector<8x128xf32>
    %c0_18 = arith.constant 0 : index
    %c0_19 = arith.constant 0 : index
    %17 = vector.load %arg6[%c0_18, %c0_19] : memref<128x128xf32, #tpu.memory_space<vmem>>, vector<128x128xf32>
    %cst_20 = arith.constant dense<0.000000e+00> : vector<8x128xf32>
    %18 = tpu.matmul %16, %17, %cst_20 {dimension_numbers = #tpu.dot_dimension_numbers<[1], [0], [0], [1], [0, 0, 1, 1], [], []>} : vector<8x128xf32>, vector<128x128xf32>, vector<8x128xf32> -> vector<8x128xf32>
    %c0_21 = arith.constant 0 : index
    %c0_22 = arith.constant 0 : index
    %19 = vector.load %arg7[%c0_21, %c0_22] : memref<1x128xf32, #tpu.memory_space<vmem>>, vector<1x128xf32>
    %20 = vector.broadcast %19 : vector<1x128xf32> to vector<8x128xf32>
    %21 = arith.addf %18, %20 : vector<8x128xf32>
    %cst_23 = arith.constant 0.000000e+00 : f32
    %22 = vector.broadcast %cst_23 : f32 to vector<8x128xf32>
    %23 = arith.maximumf %21, %22 : vector<8x128xf32>
    %c0_24 = arith.constant 0 : index
    %c0_25 = arith.constant 0 : index
    %24 = vector.load %arg8[%c0_24, %c0_25] : memref<128x128xf32, #tpu.memory_space<vmem>>, vector<128x128xf32>
    %cst_26 = arith.constant dense<0.000000e+00> : vector<8x128xf32>
    %25 = tpu.matmul %23, %24, %cst_26 {dimension_numbers = #tpu.dot_dimension_numbers<[1], [0], [0], [1], [0, 0, 1, 1], [], []>} : vector<8x128xf32>, vector<128x128xf32>, vector<8x128xf32> -> vector<8x128xf32>
    %c0_27 = arith.constant 0 : index
    %c0_28 = arith.constant 0 : index
    %26 = vector.load %arg9[%c0_27, %c0_28] : memref<1x128xf32, #tpu.memory_space<vmem>>, vector<1x128xf32>
    %27 = vector.broadcast %26 : vector<1x128xf32> to vector<8x128xf32>
    %28 = arith.addf %25, %27 : vector<8x128xf32>
    %29 = vector.extract_strided_slice %28 {offsets = [0, 0], sizes = [8, 99], strides = [1, 1]} : vector<8x128xf32> to vector<8x99xf32>
    %c0_29 = arith.constant 0 : index
    %c0_30 = arith.constant 0 : index
    %30 = vector.load %arg10[%c0_29, %c0_30] : memref<8x99xf32, #tpu.memory_space<vmem>>, vector<8x99xf32>
    tpu.vector_store %arg10[%c0_29, %c0_30], %29 {strides = array<i32>} : memref<8x99xf32, #tpu.memory_space<vmem>>, vector<8x99xf32>,
    return
  }
  func.func @transform_0(%arg0: i32) -> (i32, i32) {
    %c0_i32 = arith.constant 0 : i32
    %c0_i32_0 = arith.constant 0 : i32
    return %arg0, %c0_i32 : i32, i32
  }
  func.func @transform_1(%arg0: i32) -> (i32, i32) {
    %c0_i32 = arith.constant 0 : i32
    %c0_i32_0 = arith.constant 0 : i32
    %c0_i32_1 = arith.constant 0 : i32
    return %c0_i32, %c0_i32_0 : i32, i32
  }
  func.func @transform_2(%arg0: i32) -> (i32, i32) {
    %c0_i32 = arith.constant 0 : i32
    %c0_i32_0 = arith.constant 0 : i32
    %c0_i32_1 = arith.constant 0 : i32
    return %c0_i32, %c0_i32_0 : i32, i32
  }
  func.func @transform_3(%arg0: i32) -> (i32, i32) {
    %c0_i32 = arith.constant 0 : i32
    %c0_i32_0 = arith.constant 0 : i32
    %c0_i32_1 = arith.constant 0 : i32
    return %c0_i32, %c0_i32_0 : i32, i32
  }
  func.func @transform_4(%arg0: i32) -> (i32, i32) {
    %c0_i32 = arith.constant 0 : i32
    %c0_i32_0 = arith.constant 0 : i32
    %c0_i32_1 = arith.constant 0 : i32
    return %c0_i32, %c0_i32_0 : i32, i32
  }
  func.func @transform_5(%arg0: i32) -> (i32, i32) {
    %c0_i32 = arith.constant 0 : i32
    %c0_i32_0 = arith.constant 0 : i32
    %c0_i32_1 = arith.constant 0 : i32
    return %c0_i32, %c0_i32_0 : i32, i32
  }
  func.func @transform_6(%arg0: i32) -> (i32, i32) {
    %c0_i32 = arith.constant 0 : i32
    %c0_i32_0 = arith.constant 0 : i32
    %c0_i32_1 = arith.constant 0 : i32
    return %c0_i32, %c0_i32_0 : i32, i32
  }
  func.func @transform_7(%arg0: i32) -> (i32, i32) {
    %c0_i32 = arith.constant 0 : i32
    %c0_i32_0 = arith.constant 0 : i32
    %c0_i32_1 = arith.constant 0 : i32
    return %c0_i32, %c0_i32_0 : i32, i32
  }
  func.func @transform_8(%arg0: i32) -> (i32, i32) {
    %c0_i32 = arith.constant 0 : i32
    %c0_i32_0 = arith.constant 0 : i32
    %c0_i32_1 = arith.constant 0 : i32
    return %c0_i32, %c0_i32_0 : i32, i32
  }
  func.func @transform_9(%arg0: i32) -> (i32, i32) {
    %c0_i32 = arith.constant 0 : i32
    %c0_i32_0 = arith.constant 0 : i32
    return %arg0, %c0_i32 : i32, i32
  }
}

</mosaic_0001>

<llo_original>
// kernel: tpu_custom_call.1
$region0: #{tpu_custom_call.1}
  #allocation0 [shape = 'u32[]', space=smem, size = 0x4, offset = 0x4, fixed_abs, tag = 'smem constant byte address 0x4 - core index']
  #allocation1 [shape = 'u32[72,128]{1,0:T(1,128)}', space=vmem, size = 0x9000, scoped, tag = 'internal scratch']
  #allocation2 [shape = 'f32[8,128]{1,0:T(8,128)}', space=vmem, size = 0x1000, scoped, tag = 'scratch operand']
  %s0 = inlined_call_operand.hbm [shape: f32[16,99], index: 0, kind: input, shape index: {}]
  %s1 = inlined_call_operand.hbm [shape: f32[128,128], index: 1, kind: input, shape index: {}]
  %s2 = inlined_call_operand.vmem [shape: f32[1,128], index: 2, kind: input, shape index: {}]
  %s3 = inlined_call_operand.hbm [shape: f32[128,128], index: 3, kind: input, shape index: {}]
  %s4 = inlined_call_operand.vmem [shape: f32[1,128], index: 4, kind: input, shape index: {}]
  %s5 = inlined_call_operand.hbm [shape: f32[128,128], index: 5, kind: input, shape index: {}]
  %s6 = inlined_call_operand.vmem [shape: f32[1,128], index: 6, kind: input, shape index: {}]
  %s7 = inlined_call_operand.hbm [shape: f32[128,128], index: 7, kind: input, shape index: {}]
  %s8 = inlined_call_operand.vmem [shape: f32[1,128], index: 8, kind: input, shape index: {}]
  %s9 = inlined_call_operand.hbm [shape: f32[16,99], index: 9, kind: output, shape index: {}]
  %s10 = sld [smem:[#allocation0]]
  $region89: #{tpu_custom_call.1} parent=0
    _
  %s12 = ssub.s32 1, %s10
  %s13 = scalar_select 0, %s12, %s10
  $region1: #{tpu_custom_call.1} parent=0
    #allocation3 [shape = 'u8[8192]{0}', space=vmem, size = 0x2000, scoped, tag = 'input window, operand 0']
    #allocation4 [shape = 's32[2]{0}', space=sflag, size = 0x8, scoped, tag = 'scoped memory for tpu_custom_call.1']
    #allocation5 [shape = 's32[2]{0}', space=sflag, size = 0x8, scoped, tag = 'scoped memory for tpu_custom_call.1']
    #allocation6 [shape = 'u8[65536]{0}', space=vmem, size = 0x10000, scoped, tag = 'input window, operand 1, single buffered']
    #allocation7 [shape = 's32[1]{0}', space=sflag, size = 0x4, scoped, tag = 'scoped memory for tpu_custom_call.1']
    #allocation8 [shape = 'u8[65536]{0}', space=vmem, size = 0x10000, scoped, tag = 'input window, operand 3, single buffered']
    #allocation9 [shape = 'u8[65536]{0}', space=vmem, size = 0x10000, scoped, tag = 'input window, operand 5, single buffered']
    #allocation10 [shape = 's32[1]{0}', space=sflag, size = 0x4, scoped, tag = 'scoped memory for tpu_custom_call.1']
    #allocation11 [shape = 'u8[65536]{0}', space=vmem, size = 0x10000, scoped, tag = 'input window, operand 7, single buffered']
    #allocation12 [shape = 'u8[8192]{0}', space=vmem, size = 0x2000, scoped, tag = 'output window, operand 0']
    %14 = vsyncpa [#allocation4], 0
    %s15 = scalar_lea.sflag [#allocation4], 1
    %16 = vsyncpa %s15, 0
    %17 = vsyncpa [#allocation7], 0
    %18 = vsyncpa [#allocation10], 0
    %19 = vsyncpa [#allocation5], 0
    %s20 = scalar_lea.sflag [#allocation5], 1
    %21 = vsyncpa %s20, 0
    loop: start=0, step=1, limit=4
    $region2: #{tpu_custom_call.1} parent=1 // loop_pre_header
      _
    $region3: #{tpu_custom_call.1} parent=1 // loop_header
      %s23 = sphi 0, %s27
      %p24 = scmp.ge.s32.totalorder %s23, 4
      %s33 = sphi 0, %s35
      %s36 = sphi 0, %s33
      %s37 = sphi 0, %s36
      %s53 = sphi 0, %s37
      %s57 = sphi 0, %s57
      %s59 = sphi 0, %s57
      %s60 = sphi 0, %s59
      %s74 = sphi 0, %s60
      %s78 = sphi 0, %s78
      %s80 = sphi 0, %s78
      %s81 = sphi 0, %s80
      %s95 = sphi 0, %s81
      %s99 = sphi 0, %s99
      %s101 = sphi 0, %s99
      %s102 = sphi 0, %s101
      %s116 = sphi 0, %s102
      %s120 = sphi 0, %s120
      %s122 = sphi 0, %s120
      %s123 = sphi 0, %s122
      %s137 = sphi 0, %s123
      %s141 = sphi 0, %s141
      %s143 = sphi 0, %s141
      %s144 = sphi 0, %s143
      %s158 = sphi 0, %s144
      %s162 = sphi 0, %s162
      %s164 = sphi 0, %s162
      %s165 = sphi 0, %s164
      %s179 = sphi 0, %s165
      %s183 = sphi 0, %s183
      %s185 = sphi 0, %s183
      %s186 = sphi 0, %s185
      %s200 = sphi 0, %s186
      %s204 = sphi 0, %s204
      %s206 = sphi 0, %s204
      %s207 = sphi 0, %s206
      %s221 = sphi 0, %s207
      %s227 = sphi 0, %s229
      %s230 = sphi 0, %s227
      %s231 = sphi 0, %s230
      %s247 = sphi 0, %s231
    $region4: #{tpu_custom_call.1} parent=1 // loop_header_branch
      %26 = sbr.rel (%p24) target = $region8
    $region5: #{tpu_custom_call.1} parent=1 // loop_body
      %s28 = ssub.s32 %s23, 1
      %s29 = ssub.s32 %s23, 2
      %s30 = sadd.s32 %s23, 1
      %s31 = ssub.s32 %s23, %s30
      %p32 = scmp.eq.s32.totalorder %s31, 0
      %s34 = sadd.s32 %s33, 1
      %s35 = scalar_select %p32, %s33, %s34
      %p38 = pneg %p32
      %p39 = scmp.eq.s32.totalorder %s23, 1
      %p40 = por %p38, %p39
      %p41 = scmp.ne.s32.totalorder %s33, %s36
      %p42 = scmp.eq.s32.totalorder %s23, 0
      %p43 = por %p41, %p42
      %p44 = scmp.ne.s32.totalorder %s33, %s36
      %p45 = scmp.eq.s32.totalorder %s28, 1
      %p46 = por %p44, %p45
      %p47 = scmp.ne.s32.totalorder %s36, %s37
      %p48 = scmp.eq.s32.totalorder %s28, 0
      %p49 = por %p47, %p48
      %p50 = scmp.ne.s32.totalorder %s36, %s37
      %p51 = scmp.eq.s32.totalorder %s29, 1
      %p52 = por %p50, %p51
      %p54 = scmp.ne.s32.totalorder %s37, %s53
      %p55 = scmp.eq.s32.totalorder %s29, 0
      %p56 = por %p54, %p55
      %s58 = sadd.s32 %s57, 1
      %p61 = scmp.eq.s32.totalorder %s23, 1
      %p62 = scmp.ne.s32.totalorder %s57, %s59
      %p63 = scmp.eq.s32.totalorder %s23, 0
      %p64 = por %p62, %p63
      %p65 = scmp.ne.s32.totalorder %s57, %s59
      %p66 = scmp.eq.s32.totalorder %s28, 1
      %p67 = por %p65, %p66
      %p68 = scmp.ne.s32.totalorder %s59, %s60
      %p69 = scmp.eq.s32.totalorder %s28, 0
      %p70 = por %p68, %p69
      %p71 = scmp.ne.s32.totalorder %s59, %s60
      %p72 = scmp.eq.s32.totalorder %s29, 1
      %p73 = por %p71, %p72
      %p75 = scmp.ne.s32.totalorder %s60, %s74
      %p76 = scmp.eq.s32.totalorder %s29, 0
      %p77 = por %p75, %p76
      %s79 = sadd.s32 %s78, 1
      %p82 = scmp.eq.s32.totalorder %s23, 1
      %p83 = scmp.ne.s32.totalorder %s78, %s80
      %p84 = scmp.eq.s32.totalorder %s23, 0
      %p85 = por %p83, %p84
      %p86 = scmp.ne.s32.totalorder %s78, %s80
      %p87 = scmp.eq.s32.totalorder %s28, 1
      %p88 = por %p86, %p87
      %p89 = scmp.ne.s32.totalorder %s80, %s81
      %p90 = scmp.eq.s32.totalorder %s28, 0
      %p91 = por %p89, %p90
      %p92 = scmp.ne.s32.totalorder %s80, %s81
      %p93 = scmp.eq.s32.totalorder %s29, 1
      %p94 = por %p92, %p93
      %p96 = scmp.ne.s32.totalorder %s81, %s95
      %p97 = scmp.eq.s32.totalorder %s29, 0
      %p98 = por %p96, %p97
      %s100 = sadd.s32 %s99, 1
      %p103 = scmp.eq.s32.totalorder %s23, 1
      %p104 = scmp.ne.s32.totalorder %s99, %s101
      %p105 = scmp.eq.s32.totalorder %s23, 0
      %p106 = por %p104, %p105
      %p107 = scmp.ne.s32.totalorder %s99, %s101
      %p108 = scmp.eq.s32.totalorder %s28, 1
      %p109 = por %p107, %p108
      %p110 = scmp.ne.s32.totalorder %s101, %s102
      %p111 = scmp.eq.s32.totalorder %s28, 0
      %p112 = por %p110, %p111
      %p113 = scmp.ne.s32.totalorder %s101, %s102
      %p114 = scmp.eq.s32.totalorder %s29, 1
      %p115 = por %p113, %p114
      %p117 = scmp.ne.s32.totalorder %s102, %s116
      %p118 = scmp.eq.s32.totalorder %s29, 0
      %p119 = por %p117, %p118
      %s121 = sadd.s32 %s120, 1
      %p124 = scmp.eq.s32.totalorder %s23, 1
      %p125 = scmp.ne.s32.totalorder %s120, %s122
      %p126 = scmp.eq.s32.totalorder %s23, 0
      %p127 = por %p125, %p126
      %p128 = scmp.ne.s32.totalorder %s120, %s122
      %p129 = scmp.eq.s32.totalorder %s28, 1
      %p130 = por %p128, %p129
      %p131 = scmp.ne.s32.totalorder %s122, %s123
      %p132 = scmp.eq.s32.totalorder %s28, 0
      %p133 = por %p131, %p132
      %p134 = scmp.ne.s32.totalorder %s122, %s123
      %p135 = scmp.eq.s32.totalorder %s29, 1
      %p136 = por %p134, %p135
      %p138 = scmp.ne.s32.totalorder %s123, %s137
      %p139 = scmp.eq.s32.totalorder %s29, 0
      %p140 = por %p138, %p139
      %s142 = sadd.s32 %s141, 1
      %p145 = scmp.eq.s32.totalorder %s23, 1
      %p146 = scmp.ne.s32.totalorder %s141, %s143
      %p147 = scmp.eq.s32.totalorder %s23, 0
      %p148 = por %p146, %p147
      %p149 = scmp.ne.s32.totalorder %s141, %s143
      %p150 = scmp.eq.s32.totalorder %s28, 1
      %p151 = por %p149, %p150
      %p152 = scmp.ne.s32.totalorder %s143, %s144
      %p153 = scmp.eq.s32.totalorder %s28, 0
      %p154 = por %p152, %p153
      %p155 = scmp.ne.s32.totalorder %s143, %s144
      %p156 = scmp.eq.s32.totalorder %s29, 1
      %p157 = por %p155, %p156
      %p159 = scmp.ne.s32.totalorder %s144, %s158
      %p160 = scmp.eq.s32.totalorder %s29, 0
      %p161 = por %p159, %p160
      %s163 = sadd.s32 %s162, 1
      %p166 = scmp.eq.s32.totalorder %s23, 1
      %p167 = scmp.ne.s32.totalorder %s162, %s164
      %p168 = scmp.eq.s32.totalorder %s23, 0
      %p169 = por %p167, %p168
      %p170 = scmp.ne.s32.totalorder %s162, %s164
      %p171 = scmp.eq.s32.totalorder %s28, 1
      %p172 = por %p170, %p171
      %p173 = scmp.ne.s32.totalorder %s164, %s165
      %p174 = scmp.eq.s32.totalorder %s28, 0
      %p175 = por %p173, %p174
      %p176 = scmp.ne.s32.totalorder %s164, %s165
      %p177 = scmp.eq.s32.totalorder %s29, 1
      %p178 = por %p176, %p177
      %p180 = scmp.ne.s32.totalorder %s165, %s179
      %p181 = scmp.eq.s32.totalorder %s29, 0
      %p182 = por %p180, %p181
      %s184 = sadd.s32 %s183, 1
      %p187 = scmp.eq.s32.totalorder %s23, 1
      %p188 = scmp.ne.s32.totalorder %s183, %s185
      %p189 = scmp.eq.s32.totalorder %s23, 0
      %p190 = por %p188, %p189
      %p191 = scmp.ne.s32.totalorder %s183, %s185
      %p192 = scmp.eq.s32.totalorder %s28, 1
      %p193 = por %p191, %p192
      %p194 = scmp.ne.s32.totalorder %s185, %s186
      %p195 = scmp.eq.s32.totalorder %s28, 0
      %p196 = por %p194, %p195
      %p197 = scmp.ne.s32.totalorder %s185, %s186
      %p198 = scmp.eq.s32.totalorder %s29, 1
      %p199 = por %p197, %p198
      %p201 = scmp.ne.s32.totalorder %s186, %s200
      %p202 = scmp.eq.s32.totalorder %s29, 0
      %p203 = por %p201, %p202
      %s205 = sadd.s32 %s204, 1
      %p208 = scmp.eq.s32.totalorder %s23, 1
      %p209 = scmp.ne.s32.totalorder %s204, %s206
      %p210 = scmp.eq.s32.totalorder %s23, 0
      %p211 = por %p209, %p210
      %p212 = scmp.ne.s32.totalorder %s204, %s206
      %p213 = scmp.eq.s32.totalorder %s28, 1
      %p214 = por %p212, %p213
      %p215 = scmp.ne.s32.totalorder %s206, %s207
      %p216 = scmp.eq.s32.totalorder %s28, 0
      %p217 = por %p215, %p216
      %p218 = scmp.ne.s32.totalorder %s206, %s207
      %p219 = scmp.eq.s32.totalorder %s29, 1
      %p220 = por %p218, %p219
      %p222 = scmp.ne.s32.totalorder %s207, %s221
      %p223 = scmp.eq.s32.totalorder %s29, 0
      %p224 = por %p222, %p223
      %s225 = ssub.s32 %s23, %s30
      %p226 = scmp.eq.s32.totalorder %s225, 0
      %s228 = sadd.s32 %s227, 1
      %s229 = scalar_select %p226, %s227, %s228
      %p232 = pneg %p226
      %p233 = scmp.eq.s32.totalorder %s23, 1
      %p234 = por %p232, %p233
      %p235 = scmp.ne.s32.totalorder %s227, %s230
      %p236 = scmp.eq.s32.totalorder %s23, 0
      %p237 = por %p235, %p236
      %p238 = scmp.ne.s32.totalorder %s227, %s230
      %p239 = scmp.eq.s32.totalorder %s28, 1
      %p240 = por %p238, %p239
      %p241 = scmp.ne.s32.totalorder %s230, %s231
      %p242 = scmp.eq.s32.totalorder %s28, 0
      %p243 = por %p241, %p242
      %p244 = scmp.ne.s32.totalorder %s230, %s231
      %p245 = scmp.eq.s32.totalorder %s29, 1
      %p246 = por %p244, %p245
      %p248 = scmp.ne.s32.totalorder %s231, %s247
      %p249 = scmp.eq.s32.totalorder %s29, 0
      %p250 = por %p248, %p249
      %p251 = scmp.le.s32.totalorder 1, %s23
      %p252 = scmp.lt.s32.totalorder %s23, 3
      %p253 = pnand %p251, %p252
      %p254 = pneg %p253
      // Predicated region
      $region9: #{tpu_custom_call.1} parent=5 // pred_check
        _
      $region10: #{tpu_custom_call.1} parent=5 // pred_check_branch
        %256 = sbr.rel (%p253) target = $region12
      $region11: #{tpu_custom_call.1} parent=5 // pred_region
        %s257 = ssub.s32 %s23, 1
        // Predicated region
        $region13: #{tpu_custom_call.1} parent=11 // pred_check
          %p258 = pneg %p70
        $region14: #{tpu_custom_call.1} parent=11 // pred_check_branch
          %260 = sbr.rel (%p258) target = $region16
        $region15: #{tpu_custom_call.1} parent=11 // pred_region
          %262 = vsyncadd [#allocation7], 0
          %s263 = sshll.u32 %s1, 4
          %s264 = int_to_ptr.hbm [resolvable:$true] %s263
          %s265 = sshll.u32 [#allocation6], 4
          %s266 = int_to_ptr.vmem [resolvable:$true] %s265
          %271 = dma.hbm_to_vmem [thread:$0]  %s264, 2048, %s266, [#allocation7], 128, 128, 8
        $region16: #{tpu_custom_call.1} parent=11 // pred_fallthru
          _
        // Predicated region
        $region17: #{tpu_custom_call.1} parent=11 // pred_check
          %p272 = pneg %p91
        $region18: #{tpu_custom_call.1} parent=11 // pred_check_branch
          %274 = sbr.rel (%p272) target = $region20
        $region19: #{tpu_custom_call.1} parent=11 // pred_region
          _
        $region20: #{tpu_custom_call.1} parent=11 // pred_fallthru
          _
        // Predicated region
        $region21: #{tpu_custom_call.1} parent=11 // pred_check
          %p275 = pneg %p112
        $region22: #{tpu_custom_call.1} parent=11 // pred_check_branch
          %277 = sbr.rel (%p275) target = $region24
        $region23: #{tpu_custom_call.1} parent=11 // pred_region
          %279 = vsyncadd [#allocation7], 0
          %s280 = sshll.u32 %s3, 4
          %s281 = int_to_ptr.hbm [resolvable:$true] %s280
          %s282 = sshll.u32 [#allocation8], 4
          %s283 = int_to_ptr.vmem [resolvable:$true] %s282
          %288 = dma.hbm_to_vmem [thread:$0]  %s281, 2048, %s283, [#allocation7], 128, 128, 8
        $region24: #{tpu_custom_call.1} parent=11 // pred_fallthru
          _
        // Predicated region
        $region25: #{tpu_custom_call.1} parent=11 // pred_check
          %p289 = pneg %p133
        $region26: #{tpu_custom_call.1} parent=11 // pred_check_branch
          %291 = sbr.rel (%p289) target = $region28
        $region27: #{tpu_custom_call.1} parent=11 // pred_region
          _
        $region28: #{tpu_custom_call.1} parent=11 // pred_fallthru
          _
        // Predicated region
        $region29: #{tpu_custom_call.1} parent=11 // pred_check
          %p292 = pneg %p154
        $region30: #{tpu_custom_call.1} parent=11 // pred_check_branch
          %294 = sbr.rel (%p292) target = $region32
        $region31: #{tpu_custom_call.1} parent=11 // pred_region
          %296 = vsyncadd [#allocation10], 0
          %s297 = sshll.u32 %s5, 4
          %s298 = int_to_ptr.hbm [resolvable:$true] %s297
          %s299 = sshll.u32 [#allocation9], 4
          %s300 = int_to_ptr.vmem [resolvable:$true] %s299
          %305 = dma.hbm_to_vmem [thread:$0]  %s298, 2048, %s300, [#allocation10], 128, 128, 8
        $region32: #{tpu_custom_call.1} parent=11 // pred_fallthru
          _
        // Predicated region
        $region33: #{tpu_custom_call.1} parent=11 // pred_check
          %p306 = pneg %p175
        $region34: #{tpu_custom_call.1} parent=11 // pred_check_branch
          %308 = sbr.rel (%p306) target = $region36
        $region35: #{tpu_custom_call.1} parent=11 // pred_region
          _
        $region36: #{tpu_custom_call.1} parent=11 // pred_fallthru
          _
        // Predicated region
        $region37: #{tpu_custom_call.1} parent=11 // pred_check
          %p309 = pneg %p196
        $region38: #{tpu_custom_call.1} parent=11 // pred_check_branch
          %311 = sbr.rel (%p309) target = $region40
        $region39: #{tpu_custom_call.1} parent=11 // pred_region
          %313 = vsyncadd [#allocation10], 0
          %s314 = sshll.u32 %s7, 4
          %s315 = int_to_ptr.hbm [resolvable:$true] %s314
          %s316 = sshll.u32 [#allocation11], 4
          %s317 = int_to_ptr.vmem [resolvable:$true] %s316
          %322 = dma.hbm_to_vmem [thread:$0]  %s315, 2048, %s317, [#allocation10], 128, 128, 8
        $region40: #{tpu_custom_call.1} parent=11 // pred_fallthru
          _
        // Predicated region
        $region41: #{tpu_custom_call.1} parent=11 // pred_check
          %p323 = pneg %p217
        $region42: #{tpu_custom_call.1} parent=11 // pred_check_branch
          %325 = sbr.rel (%p323) target = $region44
        $region43: #{tpu_custom_call.1} parent=11 // pred_region
          _
        $region44: #{tpu_custom_call.1} parent=11 // pred_fallthru
          _
      $region12: #{tpu_custom_call.1} parent=5 // pred_fallthru
        _
      %p326 = scmp.lt.s32.totalorder %s23, 2
      // Predicated region
      $region45: #{tpu_custom_call.1} parent=5 // pred_check
        %p327 = pneg %p326
      $region46: #{tpu_custom_call.1} parent=5 // pred_check_branch
        %329 = sbr.rel (%p327) target = $region48
      $region47: #{tpu_custom_call.1} parent=5 // pred_region
        // Predicated region
        $region49: #{tpu_custom_call.1} parent=47 // pred_check
          %p330 = pneg %p43
        $region50: #{tpu_custom_call.1} parent=47 // pred_check_branch
          %332 = sbr.rel (%p330) target = $region52
        $region51: #{tpu_custom_call.1} parent=47 // pred_region
          %s333 = sand.u32 %s33, 1
          %s334 = scalar_lea.sflag [#allocation4], %s333
          %s335 = sand.u32 %s33, 1
          %s336 = smul.addr %s335, 8
          %s337 = scalar_lea.vmem [#allocation3], %s336
          %339 = vsyncadd %s334, 0
          %s340 = smul.addr %s23, 8
          %s341 = scalar_lea.hbm %s0, %s340
          %s343 = sshll.u32 %s341, 4
          %s344 = int_to_ptr.hbm [resolvable:$true] %s343
          %s345 = sshll.u32 %s337, 4
          %s346 = int_to_ptr.vmem [resolvable:$true] %s345
          %348 = dma.hbm_to_vmem [thread:$0]  %s344, 128, %s346, %s334
        $region52: #{tpu_custom_call.1} parent=47 // pred_fallthru
          _
      $region48: #{tpu_custom_call.1} parent=5 // pred_fallthru
        _
      %p349 = scmp.le.s32.totalorder 1, %s23
      %p350 = scmp.lt.s32.totalorder %s23, 3
      %p351 = pnand %p349, %p350
      %p352 = pneg %p351
      // Predicated region
      $region53: #{tpu_custom_call.1} parent=5 // pred_check
        _
      $region54: #{tpu_custom_call.1} parent=5 // pred_check_branch
        %354 = sbr.rel (%p351) target = $region56
      $region55: #{tpu_custom_call.1} parent=5 // pred_region
        %s355 = ssub.s32 %s23, 1
        %s356 = sand.u32 %s36, 1
        %s357 = scalar_lea.sflag [#allocation4], %s356
        %s358 = sand.u32 %s36, 1
        %s359 = smul.addr %s358, 8
        %s360 = scalar_lea.vmem [#allocation3], %s359
        // Predicated region
        $region57: #{tpu_custom_call.1} parent=55 // pred_check
          %p361 = pneg %p49
        $region58: #{tpu_custom_call.1} parent=55 // pred_check_branch
          %363 = sbr.rel (%p361) target = $region60
        $region59: #{tpu_custom_call.1} parent=55 // pred_region
          %365 = dma.done %s357, 128
        $region60: #{tpu_custom_call.1} parent=55 // pred_fallthru
          _
        // Predicated region
        $region61: #{tpu_custom_call.1} parent=55 // pred_check
          %p366 = pneg %p70
        $region62: #{tpu_custom_call.1} parent=55 // pred_check_branch
          %368 = sbr.rel (%p366) target = $region64
        $region63: #{tpu_custom_call.1} parent=55 // pred_region
          %370 = dma.done [#allocation7], 2048
        $region64: #{tpu_custom_call.1} parent=55 // pred_fallthru
          _
        // Predicated region
        $region65: #{tpu_custom_call.1} parent=55 // pred_check
          %p371 = pneg %p112
        $region66: #{tpu_custom_call.1} parent=55 // pred_check_branch
          %373 = sbr.rel (%p371) target = $region68
        $region67: #{tpu_custom_call.1} parent=55 // pred_region
          %375 = dma.done [#allocation7], 2048
        $region68: #{tpu_custom_call.1} parent=55 // pred_fallthru
          _
        // Predicated region
        $region69: #{tpu_custom_call.1} parent=55 // pred_check
          %p376 = pneg %p154
        $region70: #{tpu_custom_call.1} parent=55 // pred_check_branch
          %378 = sbr.rel (%p376) target = $region72
        $region71: #{tpu_custom_call.1} parent=55 // pred_region
          %380 = dma.done [#allocation10], 2048
        $region72: #{tpu_custom_call.1} parent=55 // pred_fallthru
          _
        // Predicated region
        $region73: #{tpu_custom_call.1} parent=55 // pred_check
          %p381 = pneg %p196
        $region74: #{tpu_custom_call.1} parent=55 // pred_check_branch
          %383 = sbr.rel (%p381) target = $region76
        $region75: #{tpu_custom_call.1} parent=55 // pred_region
          %385 = dma.done [#allocation10], 2048
        $region76: #{tpu_custom_call.1} parent=55 // pred_fallthru
          _
        %s386 = sand.u32 %s36, 1
        %s387 = scalar_lea.sflag [#allocation4], %s386
        %s388 = sand.u32 %s36, 1
        %s389 = smul.addr %s388, 8
        %s390 = scalar_lea.vmem [#allocation3], %s389
        %p391 = pneg %p49
        %p392 = pneg %p46
        %p393 = pneg %p70
        %p394 = pneg %p67
        %p395 = pneg %p91
        %p396 = pneg %p88
        %p397 = pneg %p112
        %p398 = pneg %p109
        %p399 = pneg %p133
        %p400 = pneg %p130
        %p401 = pneg %p154
        %p402 = pneg %p151
        %p403 = pneg %p175
        %p404 = pneg %p172
        %p405 = pneg %p196
        %p406 = pneg %p193
        %p407 = pneg %p217
        %p408 = pneg %p214
        %p409 = pneg %p243
        %p410 = pneg %p240
        %s411 = sand.u32 %s230, 1
        %s412 = scalar_lea.sflag [#allocation5], %s411
        %s413 = sand.u32 %s230, 1
        %s414 = smul.addr %s413, 8
        %s415 = scalar_lea.vmem [#allocation12], %s414
        %416 = vst [vmem:[#allocation2] sm:$0xff] 0.0
        %v417 = vld [vmem:[%s360] sm:$0xff]
        %vm418 = vcmask 809984
        %419 = vst.msk [vmem:[#allocation2] sm:$0xff] %vm418, %v417
        %v420 = vld [vmem:[#allocation2] sm:$0xff]
        %v421 = vld [vmem:[#allocation6] sm:$0xff]
        %v422 = vld [vmem:[#allocation6 + $0x8] sm:$0xff]
        %v423 = vld [vmem:[#allocation6 + $0x10] sm:$0xff]
        %v424 = vld [vmem:[#allocation6 + $0x18] sm:$0xff]
        %v425 = vld [vmem:[#allocation6 + $0x20] sm:$0xff]
        %v426 = vld [vmem:[#allocation6 + $0x28] sm:$0xff]
        %v427 = vld [vmem:[#allocation6 + $0x30] sm:$0xff]
        %v428 = vld [vmem:[#allocation6 + $0x38] sm:$0xff]
        %v429 = vld [vmem:[#allocation6 + $0x40] sm:$0xff]
        %v430 = vld [vmem:[#allocation6 + $0x48] sm:$0xff]
        %v431 = vld [vmem:[#allocation6 + $0x50] sm:$0xff]
        %v432 = vld [vmem:[#allocation6 + $0x58] sm:$0xff]
        %v433 = vld [vmem:[#allocation6 + $0x60] sm:$0xff]
        %v434 = vld [vmem:[#allocation6 + $0x68] sm:$0xff]
        %v435 = vld [vmem:[#allocation6 + $0x70] sm:$0xff]
        %v436 = vld [vmem:[#allocation6 + $0x78] sm:$0xff]
        %v437 = vld [vmem:[%s2] sm:$0x1]
        %v439 = vperm.slane %v437, 0
        %441 = vmatpush.msra.mxu0 %v436
        %442 = vmatpush.msra.mxu0 %v435
        %443 = vmatpush.msra.mxu0 %v434
        %444 = vmatpush.msra.mxu0 %v433
        %445 = vmatpush.msra.mxu0 %v432
        %446 = vmatpush.msra.mxu0 %v431
        %447 = vmatpush.msra.mxu0 %v430
        %448 = vmatpush.msra.mxu0 %v429
        %449 = vmatpush.msra.mxu0 %v428
        %450 = vmatpush.msra.mxu0 %v427
        %451 = vmatpush.msra.mxu0 %v426
        %452 = vmatpush.msra.mxu0 %v425
        %453 = vmatpush.msra.mxu0 %v424
        %454 = vmatpush.msra.mxu0 %v423
        %455 = vmatpush.msra.mxu0 %v422
        %456 = vmatpush.msra.mxu0 %v421
        %457 = vmatmul.f32.gmra.mxu0 %v420
        %v458 = vpop.f32.mrf.mxu0
        %v459 = vadd.f32 %v439, %v458
        %460 = vdwg.mxu0
        %v461 = vmax.f32 %v459, 0.0
        %v462 = vld [vmem:[#allocation8] sm:$0xff]
        %v463 = vld [vmem:[#allocation8 + $0x8] sm:$0xff]
        %v464 = vld [vmem:[#allocation8 + $0x10] sm:$0xff]
        %v465 = vld [vmem:[#allocation8 + $0x18] sm:$0xff]
        %v466 = vld [vmem:[#allocation8 + $0x20] sm:$0xff]
        %v467 = vld [vmem:[#allocation8 + $0x28] sm:$0xff]
        %v468 = vld [vmem:[#allocation8 + $0x30] sm:$0xff]
        %v469 = vld [vmem:[#allocation8 + $0x38] sm:$0xff]
        %v470 = vld [vmem:[#allocation8 + $0x40] sm:$0xff]
        %v471 = vld [vmem:[#allocation8 + $0x48] sm:$0xff]
        %v472 = vld [vmem:[#allocation8 + $0x50] sm:$0xff]
        %v473 = vld [vmem:[#allocation8 + $0x58] sm:$0xff]
        %v474 = vld [vmem:[#allocation8 + $0x60] sm:$0xff]
        %v475 = vld [vmem:[#allocation8 + $0x68] sm:$0xff]
        %v476 = vld [vmem:[#allocation8 + $0x70] sm:$0xff]
        %v477 = vld [vmem:[#allocation8 + $0x78] sm:$0xff]
        %v478 = vld [vmem:[%s4] sm:$0x1]
        %v480 = vperm.slane %v478, 0
        %482 = vmatpush.msra.mxu0 %v477
        %483 = vmatpush.msra.mxu0 %v476
        %484 = vmatpush.msra.mxu0 %v475
        %485 = vmatpush.msra.mxu0 %v474
        %486 = vmatpush.msra.mxu0 %v473
        %487 = vmatpush.msra.mxu0 %v472
        %488 = vmatpush.msra.mxu0 %v471
        %489 = vmatpush.msra.mxu0 %v470
        %490 = vmatpush.msra.mxu0 %v469
        %491 = vmatpush.msra.mxu0 %v468
        %492 = vmatpush.msra.mxu0 %v467
        %493 = vmatpush.msra.mxu0 %v466
        %494 = vmatpush.msra.mxu0 %v465
        %495 = vmatpush.msra.mxu0 %v464
        %496 = vmatpush.msra.mxu0 %v463
        %497 = vmatpush.msra.mxu0 %v462
        %498 = vmatmul.f32.gmra.mxu0 %v461
        %v499 = vpop.f32.mrf.mxu0
        %v500 = vadd.f32 %v480, %v499
        %501 = vdwg.mxu0
        %v502 = vld [vmem:[#allocation9] sm:$0xff]
        %v503 = vld [vmem:[#allocation9 + $0x8] sm:$0xff]
        %v504 = vld [vmem:[#allocation9 + $0x10] sm:$0xff]
        %v505 = vld [vmem:[#allocation9 + $0x18] sm:$0xff]
        %v506 = vld [vmem:[#allocation9 + $0x20] sm:$0xff]
        %v507 = vld [vmem:[#allocation9 + $0x28] sm:$0xff]
        %v508 = vld [vmem:[#allocation9 + $0x30] sm:$0xff]
        %v509 = vld [vmem:[#allocation9 + $0x38] sm:$0xff]
        %v510 = vld [vmem:[#allocation9 + $0x40] sm:$0xff]
        %v511 = vld [vmem:[#allocation9 + $0x48] sm:$0xff]
        %v512 = vld [vmem:[#allocation9 + $0x50] sm:$0xff]
        %v513 = vld [vmem:[#allocation9 + $0x58] sm:$0xff]
        %v514 = vld [vmem:[#allocation9 + $0x60] sm:$0xff]
        %v515 = vld [vmem:[#allocation9 + $0x68] sm:$0xff]
        %v516 = vld [vmem:[#allocation9 + $0x70] sm:$0xff]
        %v517 = vld [vmem:[#allocation9 + $0x78] sm:$0xff]
        %v518 = vld [vmem:[%s6] sm:$0x1]
        %v520 = vperm.slane %v518, 0
        %522 = vmatpush.msra.mxu0 %v517
        %523 = vmatpush.msra.mxu0 %v516
        %524 = vmatpush.msra.mxu0 %v515
        %525 = vmatpush.msra.mxu0 %v514
        %526 = vmatpush.msra.mxu0 %v513
        %527 = vmatpush.msra.mxu0 %v512
        %528 = vmatpush.msra.mxu0 %v511
        %529 = vmatpush.msra.mxu0 %v510
        %530 = vmatpush.msra.mxu0 %v509
        %531 = vmatpush.msra.mxu0 %v508
        %532 = vmatpush.msra.mxu0 %v507
        %533 = vmatpush.msra.mxu0 %v506
        %534 = vmatpush.msra.mxu0 %v505
        %535 = vmatpush.msra.mxu0 %v504
        %536 = vmatpush.msra.mxu0 %v503
        %537 = vmatpush.msra.mxu0 %v502
        %538 = vmatmul.f32.gmra.mxu0 %v500
        %v539 = vpop.f32.mrf.mxu0
        %v540 = vadd.f32 %v520, %v539
        %541 = vdwg.mxu0
        %v542 = vmax.f32 %v540, 0.0
        %v543 = vld [vmem:[#allocation11] sm:$0xff]
        %v544 = vld [vmem:[#allocation11 + $0x8] sm:$0xff]
        %v545 = vld [vmem:[#allocation11 + $0x10] sm:$0xff]
        %v546 = vld [vmem:[#allocation11 + $0x18] sm:$0xff]
        %v547 = vld [vmem:[#allocation11 + $0x20] sm:$0xff]
        %v548 = vld [vmem:[#allocation11 + $0x28] sm:$0xff]
        %v549 = vld [vmem:[#allocation11 + $0x30] sm:$0xff]
        %v550 = vld [vmem:[#allocation11 + $0x38] sm:$0xff]
        %v551 = vld [vmem:[#allocation11 + $0x40] sm:$0xff]
        %v552 = vld [vmem:[#allocation11 + $0x48] sm:$0xff]
        %v553 = vld [vmem:[#allocation11 + $0x50] sm:$0xff]
        %v554 = vld [vmem:[#allocation11 + $0x58] sm:$0xff]
        %v555 = vld [vmem:[#allocation11 + $0x60] sm:$0xff]
        %v556 = vld [vmem:[#allocation11 + $0x68] sm:$0xff]
        %v557 = vld [vmem:[#allocation11 + $0x70] sm:$0xff]
        %v558 = vld [vmem:[#allocation11 + $0x78] sm:$0xff]
        %v559 = vld [vmem:[%s8] sm:$0x1]
        %v561 = vperm.slane %v559, 0
        %563 = vmatpush.msra.mxu0 %v558
        %564 = vmatpush.msra.mxu0 %v557
        %565 = vmatpush.msra.mxu0 %v556
        %566 = vmatpush.msra.mxu0 %v555
        %567 = vmatpush.msra.mxu0 %v554
        %568 = vmatpush.msra.mxu0 %v553
        %569 = vmatpush.msra.mxu0 %v552
        %570 = vmatpush.msra.mxu0 %v551
        %571 = vmatpush.msra.mxu0 %v550
        %572 = vmatpush.msra.mxu0 %v549
        %573 = vmatpush.msra.mxu0 %v548
        %574 = vmatpush.msra.mxu0 %v547
        %575 = vmatpush.msra.mxu0 %v546
        %576 = vmatpush.msra.mxu0 %v545
        %577 = vmatpush.msra.mxu0 %v544
        %578 = vmatpush.msra.mxu0 %v543
        %579 = vmatmul.f32.gmra.mxu0 %v542
        %v580 = vpop.f32.mrf.mxu0
        %v581 = vadd.f32 %v561, %v580
        %582 = vdwg.mxu0
        %583 = vst.msk [vmem:[%s415] sm:$0xff] %vm418, %v581
        %s584 = sand.u32 %s230, 1
        %s585 = scalar_lea.sflag [#allocation5], %s584
        %s586 = sand.u32 %s230, 1
        %s587 = smul.addr %s586, 8
        %s588 = scalar_lea.vmem [#allocation12], %s587
        // Predicated region
        $region77: #{tpu_custom_call.1} parent=55 // pred_check
          %p589 = pneg %p240
        $region78: #{tpu_custom_call.1} parent=55 // pred_check_branch
          %591 = sbr.rel (%p589) target = $region80
        $region79: #{tpu_custom_call.1} parent=55 // pred_region
          %593 = vsyncadd %s585, 0
          %s594 = smul.addr %s28, 8
          %s595 = scalar_lea.hbm %s9, %s594
          %s597 = sshll.u32 %s588, 4
          %s598 = int_to_ptr.vmem [resolvable:$true] %s597
          %s599 = sshll.u32 %s595, 4
          %s600 = int_to_ptr.hbm [resolvable:$true] %s599
          %602 = dma.vmem_to_hbm [thread:$0]  %s598, 128, %s600, %s585
        $region80: #{tpu_custom_call.1} parent=55 // pred_fallthru
          _
      $region56: #{tpu_custom_call.1} parent=5 // pred_fallthru
        _
      %p603 = scmp.le.s32.totalorder 2, %s23
      // Predicated region
      $region81: #{tpu_custom_call.1} parent=5 // pred_check
        %p604 = pneg %p603
      $region82: #{tpu_custom_call.1} parent=5 // pred_check_branch
        %606 = sbr.rel (%p604) target = $region84
      $region83: #{tpu_custom_call.1} parent=5 // pred_region
        %s607 = ssub.s32 %s23, 2
        // Predicated region
        $region85: #{tpu_custom_call.1} parent=83 // pred_check
          %p608 = pneg %p246
        $region86: #{tpu_custom_call.1} parent=83 // pred_check_branch
          %610 = sbr.rel (%p608) target = $region88
        $region87: #{tpu_custom_call.1} parent=83 // pred_region
          %s611 = sand.u32 %s231, 1
          %s612 = scalar_lea.sflag [#allocation5], %s611
          %s613 = sand.u32 %s231, 1
          %s614 = smul.addr %s613, 8
          %s615 = scalar_lea.vmem [#allocation12], %s614
          %617 = dma.done %s612, 128
        $region88: #{tpu_custom_call.1} parent=83 // pred_fallthru
          _
      $region84: #{tpu_custom_call.1} parent=5 // pred_fallthru
        _
    $region6: #{tpu_custom_call.1} parent=1 // loop_footer
      %s27 = sadd.s32 1, %s23
    $region7: #{tpu_custom_call.1} parent=1 // loop_footer_branch
      %22 = sbr.rel target = $region3
    $region8: #{tpu_custom_call.1} parent=1 // loop_exit
      _
    %618 = vsyncpa [#allocation4], 1
    %s619 = scalar_lea.sflag [#allocation4], 1
    %620 = vsyncpa %s619, 1
    %621 = vsyncpa [#allocation7], 1
    %622 = vsyncpa [#allocation10], 1
    %623 = vsyncpa [#allocation5], 1
    %s624 = scalar_lea.sflag [#allocation5], 1
    %625 = vsyncpa %s624, 1

</llo_original>
